<compile_context>
chip_gen: v6e
topology: v6e:2x2x1
jax: 0.10.0
libtpu: 0.0.40
codegen_flags: <defaults>
</compile_context>

<pallas_src>
import functools

import jax
import jax.numpy as jnp
from jax import lax
from jax.experimental import pallas as pl
from jax.experimental.pallas import tpu as pltpu


_NUM_LIP_LANDMARKS = 47                    # first 47 landmarks are lip landmarks
_LIP_LANE_LIMIT = 2 * _NUM_LIP_LANDMARKS   # interleaved (x, y) -> first 94 lanes
_TILE_ROWS_MAX = 1024                      # rows per grid step (multiple of 8)


def _landmark_loss_kernel(pred_ref, label_ref, out_ref, *,
                          tile_rows, total_rows, needs_row_mask):
    pred = pred_ref[...].astype(jnp.float32)
    label = label_ref[...].astype(jnp.float32)
    diff = jnp.abs(pred - label)

    # Fused weights: lip lanes (landmark < 47 -> lane < 94) count twice.
    lane = lax.broadcasted_iota(jnp.int32, diff.shape, 1)
    w = jnp.where(lane < _LIP_LANE_LIMIT, 2.0, 1.0).astype(jnp.float32)
    contrib = diff * w

    if needs_row_mask:
        # Partial last tile: select 0 for padded rows (NaN-safe, unlike *0).
        row = (lax.broadcasted_iota(jnp.int32, diff.shape, 0)
               + pl.program_id(0) * tile_rows)
        contrib = jnp.where(row < total_rows, contrib, 0.0)

    partial = jnp.sum(contrib)

    # One unmasked, lane-dense (8,128) store per tile: the partial lives in
    # element (0,0), zeros elsewhere, so the wrapper-side sum stays exact.
    sub = lax.broadcasted_iota(jnp.int32, (8, 128), 0)
    ln = lax.broadcasted_iota(jnp.int32, (8, 128), 1)
    out_ref[...] = jnp.where((sub == 0) & (ln == 0), partial, 0.0)


def landmark_loss(pred, label):
    """pred, label: (B, T, C) with C = 2 * num_landmarks (interleaved x/y)."""
    assert pred.shape == label.shape
    B, T, C = pred.shape
    assert C % 2 == 0

    total_rows = B * T
    # No wrapper-side dtype cast: stream native dtype, upcast inside the kernel.
    pred2d = pred.reshape(total_rows, C)
    label2d = label.reshape(total_rows, C)

    if total_rows <= _TILE_ROWS_MAX:
        tile_rows = total_rows            # single block == full array dims
    else:
        tile_rows = _TILE_ROWS_MAX        # multiple of 8
    num_tiles = pl.cdiv(total_rows, tile_rows)
    needs_row_mask = (num_tiles * tile_rows) != total_rows

    kernel = functools.partial(
        _landmark_loss_kernel,
        tile_rows=tile_rows,
        total_rows=total_rows,
        needs_row_mask=needs_row_mask,
    )

    # NOTE: C=136 pads to 256 lanes per (8,128) tile (~1.9x extra HBM/VMEM
    # traffic); a lane-dense (multiple-of-128) producer layout would fix this
    # upstream of the kernel.
    partials = pl.pallas_call(
        kernel,
        out_shape=jax.ShapeDtypeStruct((num_tiles * 8, 128), jnp.float32),
        grid=(num_tiles,),
        in_specs=[
            pl.BlockSpec((tile_rows, C), lambda i: (i, 0)),
            pl.BlockSpec((tile_rows, C), lambda i: (i, 0)),
        ],
        out_specs=pl.BlockSpec((8, 128), lambda i: (i, 0)),
        compiler_params=pltpu.CompilerParams(
            dimension_semantics=("parallel",),   # both TCs stream rows on v7x
        ),
    )(pred2d, label2d)

    n = jnp.float32(total_rows * C)
    return 0.8 * jnp.sum(partials) / n


def landmark_loss_ref(pred, label):
    """Pure-JAX reference mirroring the PyTorch module."""
    B, T, C = pred.shape
    shape4 = (B, T, C // 2, 2)
    lip = jnp.zeros(shape4, jnp.float32).at[:, :, :47, :].set(1.0).reshape(B, T, C)
    h = jnp.zeros(shape4, jnp.float32).at[:, :, :, 0].set(1.0).reshape(B, T, C)
    v = jnp.zeros(shape4, jnp.float32).at[:, :, :, 1].set(1.0).reshape(B, T, C)
    l1 = lambda a, b: jnp.mean(jnp.abs(a - b))
    return (0.4 * l1(pred * h, label * h)
            + 0.4 * l1(pred * v, label * v)
            + 0.8 * l1(pred * lip, label * lip)
            + 0.4 * l1(pred, label))


if __name__ == "__main__":
    # 68 landmarks -> C = 136 (interleaved x/y); lip mask = first 47 landmarks.
    B, T, C = 2, 8, 136
    key = jax.random.PRNGKey(0)
    k1, k2, k3, k4 = jax.random.split(key, 4)
    pred = jax.random.normal(k1, (B, T, C), dtype=jnp.float32)
    label = jax.random.normal(k2, (B, T, C), dtype=jnp.float32)

    loss = jax.block_until_ready(landmark_loss(pred, label))
    ref = jax.block_until_ready(landmark_loss_ref(pred, label))
    assert jnp.allclose(loss, ref, rtol=1e-5, atol=1e-5), (loss, ref)

    # Exercise the multi-tile / masked-tail path (1280 rows -> 2 tiles of 1024).
    B2, T2 = 16, 80
    pred2 = jax.random.normal(k3, (B2, T2, C), dtype=jnp.float32)
    label2 = jax.random.normal(k4, (B2, T2, C), dtype=jnp.float32)
    loss2 = jax.block_until_ready(landmark_loss(pred2, label2))
    ref2 = jax.block_until_ready(landmark_loss_ref(pred2, label2))
    assert jnp.allclose(loss2, ref2, rtol=1e-5, atol=1e-5), (loss2, ref2)

    print("KERNEL_OK")
</pallas_src>

<mosaic_0001>
module attributes {stable_mosaic.version = 11 : i64} {
  func.func @_landmark_loss_kernel(%arg0: i32, %arg1: memref<16x136xf32, #tpu.memory_space<vmem>>, %arg2: memref<16x136xf32, #tpu.memory_space<vmem>>, %arg3: memref<8x128xf32, #tpu.memory_space<vmem>>) attributes {dimension_semantics = [#tpu.dimension_semantics<parallel>], iteration_bounds = array<i64: 1>, scalar_prefetch = 0 : i64, scratch_operands = 0 : i64, tpu.core_type = #tpu.core_type<tc>, window_params = [{transform_indices = @transform_0, window_bounds = array<i64: 16, 136>}, {transform_indices = @transform_1, window_bounds = array<i64: 16, 136>}, {transform_indices = @transform_2, window_bounds = array<i64: 8, 128>}]} {
    %c0 = arith.constant 0 : index
    %c0_0 = arith.constant 0 : index
    %0 = vector.load %arg1[%c0, %c0_0] : memref<16x136xf32, #tpu.memory_space<vmem>>, vector<16x136xf32>
    %c0_1 = arith.constant 0 : index
    %c0_2 = arith.constant 0 : index
    %1 = vector.load %arg2[%c0_1, %c0_2] : memref<16x136xf32, #tpu.memory_space<vmem>>, vector<16x136xf32>
    %2 = arith.subf %0, %1 : vector<16x136xf32>
    %3 = math.absf %2 : vector<16x136xf32>
    %4 = tpu.iota {dimensions = array<i32: 1>} : vector<16x136xi32>
    %c94_i32 = arith.constant 94 : i32
    %5 = vector.broadcast %c94_i32 : i32 to vector<16x136xi32>
    %6 = arith.cmpi slt, %4, %5 : vector<16x136xi32>
    %cst = arith.constant 2.000000e+00 : f32
    %cst_3 = arith.constant 1.000000e+00 : f32
    %7 = vector.broadcast %cst : f32 to vector<16x136xf32>
    %8 = vector.broadcast %cst_3 : f32 to vector<16x136xf32>
    %9 = arith.select %6, %7, %8 : vector<16x136xi1>, vector<16x136xf32>
    %10 = arith.mulf %3, %9 : vector<16x136xf32>
    %11 = vector.shape_cast %10 : vector<16x136xf32> to vector<1x16x136xf32>
    %cst_4 = arith.constant dense<0.000000e+00> : vector<1xf32>
    %12 = vector.multi_reduction <add>, %11, %cst_4 [1, 2] : vector<1x16x136xf32> to vector<1xf32>
    %13 = vector.shape_cast %12 : vector<1xf32> to vector<1x1x1xf32>
    %14 = vector.extract %13[0, 0, 0] : f32 from vector<1x1x1xf32>
    %15 = tpu.iota {dimensions = array<i32: 0>} : vector<8x128xi32>
    %16 = tpu.iota {dimensions = array<i32: 1>} : vector<8x128xi32>
    %c0_i32 = arith.constant 0 : i32
    %17 = vector.broadcast %c0_i32 : i32 to vector<8x128xi32>
    %18 = arith.cmpi eq, %15, %17 : vector<8x128xi32>
    %c0_i32_5 = arith.constant 0 : i32
    %19 = vector.broadcast %c0_i32_5 : i32 to vector<8x128xi32>
    %20 = arith.cmpi eq, %16, %19 : vector<8x128xi32>
    %21 = arith.andi %18, %20 : vector<8x128xi1>
    %cst_6 = arith.constant 0.000000e+00 : f32
    %22 = vector.broadcast %14 : f32 to vector<8x128xf32>
    %23 = vector.broadcast %cst_6 : f32 to vector<8x128xf32>
    %24 = arith.select %21, %22, %23 : vector<8x128xi1>, vector<8x128xf32>
    %c0_7 = arith.constant 0 : index
    %c0_8 = arith.constant 0 : index
    %25 = vector.load %arg3[%c0_7, %c0_8] : memref<8x128xf32, #tpu.memory_space<vmem>>, vector<8x128xf32>
    tpu.vector_store %arg3[%c0_7, %c0_8], %24 {strides = array<i32>} : memref<8x128xf32, #tpu.memory_space<vmem>>, vector<8x128xf32>,
    return
  }
  func.func @transform_0(%arg0: i32) -> (i32, i32) {
    %c0_i32 = arith.constant 0 : i32
    %c0_i32_0 = arith.constant 0 : i32
    return %arg0, %c0_i32 : i32, i32
  }
  func.func @transform_1(%arg0: i32) -> (i32, i32) {
    %c0_i32 = arith.constant 0 : i32
    %c0_i32_0 = arith.constant 0 : i32
    return %arg0, %c0_i32 : i32, i32
  }
  func.func @transform_2(%arg0: i32) -> (i32, i32) {
    %c0_i32 = arith.constant 0 : i32
    %c0_i32_0 = arith.constant 0 : i32
    return %arg0, %c0_i32 : i32, i32
  }
}

</mosaic_0001>

<llo_original>
// kernel: tpu_custom_call.1
$region0: #{tpu_custom_call.1}
  #allocation0 [shape = 'u32[]', space=smem, size = 0x4, offset = 0x4, fixed_abs, tag = 'smem constant byte address 0x4 - core index']
  #allocation1 [shape = 'u32[144,128]{1,0:T(1,128)}', space=vmem, size = 0x12000, scoped, tag = 'internal scratch']
  %s0 = inlined_call_operand.hbm [shape: f32[16,136], index: 0, kind: input, shape index: {}]
  %s1 = inlined_call_operand.hbm [shape: f32[16,136], index: 1, kind: input, shape index: {}]
  %s2 = inlined_call_operand.hbm [shape: f32[8,128], index: 2, kind: output, shape index: {}]
  %s3 = sld [smem:[#allocation0]]
  $region26: #{tpu_custom_call.1} parent=0
    _
  %s5 = ssub.s32 1, %s3
  %s6 = scalar_select 0, %s5, %s3
  $region1: #{tpu_custom_call.1} parent=0
    #allocation2 [shape = 'u8[16384]{0}', space=vmem, size = 0x4000, scoped, tag = 'input window, operand 0, single buffered']
    #allocation3 [shape = 's32[1]{0}', space=sflag, size = 0x4, scoped, tag = 'scoped memory for tpu_custom_call.1']
    #allocation4 [shape = 's32[1]{0}', space=sflag, size = 0x4, scoped, tag = 'scoped memory for tpu_custom_call.1']
    #allocation5 [shape = 'u8[16384]{0}', space=vmem, size = 0x4000, scoped, tag = 'input window, operand 1, single buffered']
    #allocation6 [shape = 's32[1]{0}', space=sflag, size = 0x4, scoped, tag = 'scoped memory for tpu_custom_call.1']
    #allocation7 [shape = 'u8[4096]{0}', space=vmem, size = 0x1000, scoped, tag = 'output window, operand 0, single buffered']
    %7 = vsyncpa [#allocation3], 0
    %8 = vsyncpa [#allocation6], 0
    %9 = vsyncpa [#allocation4], 0
    // Predicated region
    $region2: #{tpu_custom_call.1} parent=1 // pred_check
      _
    $region3: #{tpu_custom_call.1} parent=1 // pred_check_branch
      %11 = sbr.rel (0) target = $region5
    $region4: #{tpu_custom_call.1} parent=1 // pred_region
      %s13 = ssub.s32 512, 512
      %14 = vsyncadd [#allocation3], %s13
      %s15 = sshll.u32 [#allocation2], 4
      %s16 = int_to_ptr.vmem [resolvable:$true] %s15
      %21 = dma.hbm_to_vmem [thread:$0]  %s0, 512, %s16, [#allocation3], 256, 256, 16
    $region5: #{tpu_custom_call.1} parent=1 // pred_fallthru
      _
    // Predicated region
    $region6: #{tpu_custom_call.1} parent=1 // pred_check
      _
    $region7: #{tpu_custom_call.1} parent=1 // pred_check_branch
      %23 = sbr.rel (0) target = $region9
    $region8: #{tpu_custom_call.1} parent=1 // pred_region
      %s25 = ssub.s32 512, 512
      %26 = vsyncadd [#allocation6], %s25
      %s27 = sshll.u32 [#allocation5], 4
      %s28 = int_to_ptr.vmem [resolvable:$true] %s27
      %33 = dma.hbm_to_vmem [thread:$0]  %s1, 512, %s28, [#allocation6], 256, 256, 16
    $region9: #{tpu_custom_call.1} parent=1 // pred_fallthru
      _
    // Predicated region
    $region10: #{tpu_custom_call.1} parent=1 // pred_check
      _
    $region11: #{tpu_custom_call.1} parent=1 // pred_check_branch
      %35 = sbr.rel (0) target = $region13
    $region12: #{tpu_custom_call.1} parent=1 // pred_region
      %36 = dma.done [#allocation3], 512
    $region13: #{tpu_custom_call.1} parent=1 // pred_fallthru
      _
    // Predicated region
    $region14: #{tpu_custom_call.1} parent=1 // pred_check
      _
    $region15: #{tpu_custom_call.1} parent=1 // pred_check_branch
      %38 = sbr.rel (0) target = $region17
    $region16: #{tpu_custom_call.1} parent=1 // pred_region
      %39 = dma.done [#allocation6], 512
    $region17: #{tpu_custom_call.1} parent=1 // pred_fallthru
      _
    %v40 = vld [vmem:[#allocation2] sm:$0xff]
    %v41 = vld [vmem:[#allocation2 + $0x8] sm:$0xff]
    %v42 = vld [vmem:[#allocation2 + $0x10] sm:$0xff]
    %v43 = vld [vmem:[#allocation2 + $0x18] sm:$0xff]
    %v44 = vld [vmem:[#allocation5] sm:$0xff]
    %v45 = vld [vmem:[#allocation5 + $0x8] sm:$0xff]
    %v46 = vld [vmem:[#allocation5 + $0x10] sm:$0xff]
    %v47 = vld [vmem:[#allocation5 + $0x18] sm:$0xff]
    %v48 = vsub.f32 %v40, %v44
    %v49 = vsub.f32 %v41, %v45
    %v50 = vsub.f32 %v42, %v46
    %v51 = vsub.f32 %v43, %v47
    %v52 = vand.u32 2147483647, %v48
    %v53 = vand.u32 2147483647, %v49
    %v54 = vand.u32 2147483647, %v50
    %v55 = vand.u32 2147483647, %v51
    %v56 = vlaneseq
    %v57 = vand.u32 %v56, 127
    %v58 = vadd.s32 %v57, 128
    %vm59 = vcmp.lt.s32.totalorder %v57, 94
    %vm60 = vcmp.lt.s32.totalorder %v58, 94
    %v61 = vsel %vm59, 2.0, 1.0
    %v62 = vsel %vm60, 2.0, 1.0
    %v63 = vmul.f32 %v52, %v61
    %v64 = vmul.f32 %v53, %v62
    %v65 = vmul.f32 %v54, %v61
    %v66 = vmul.f32 %v55, %v62
    %vm67 = vcmask 64512
    %v68 = vsel %vm67, %v64, 0.0
    %v69 = vadd.f32 %v63, %v68
    %v70 = vadd.f32 %v69, %v65
    %v71 = vsel %vm67, %v66, 0.0
    %v72 = vadd.f32 %v70, %v71
    %73 = vadd.xlane.f32.xlu0 %v72
    %v74 = vpop.xlane.xlu0 %73
    %v75 = vrot.slane %v74, 4
    %v76 = vadd.f32 %v74, %v75
    %v77 = vrot.slane %v76, 2
    %v78 = vadd.f32 %v76, %v77
    %v79 = vrot.slane %v78, 1
    %v80 = vadd.f32 %v78, %v79
    %s81 = vtos %v80
    %v82 = vlaneseq
    %v83 = vshrl.u32 %v82, 7
    %vm84 = vcmp.eq.s32.totalorder %v83, 0
    %vm85 = vcmp.eq.s32.totalorder %v57, 0
    %vm86 = vmand %vm84, %vm85
    %v87 = vstv %s81
    %v88 = vsel %vm86, %v87, 0.0
    %89 = vst [vmem:[#allocation7] sm:$0xff] %v88
    // Predicated region
    $region18: #{tpu_custom_call.1} parent=1 // pred_check
      _
    $region19: #{tpu_custom_call.1} parent=1 // pred_check_branch
      %91 = sbr.rel (0) target = $region21
    $region20: #{tpu_custom_call.1} parent=1 // pred_region
      %s93 = ssub.s32 128, 128
      %94 = vsyncadd [#allocation4], %s93
      %s96 = sshll.u32 [#allocation7], 4
      %s97 = int_to_ptr.vmem [resolvable:$true] %s96
      %99 = dma.vmem_to_hbm [thread:$0]  %s97, 128, %s2, [#allocation4]
    $region21: #{tpu_custom_call.1} parent=1 // pred_fallthru
      _
    // Predicated region
    $region22: #{tpu_custom_call.1} parent=1 // pred_check
      _
    $region23: #{tpu_custom_call.1} parent=1 // pred_check_branch
      %101 = sbr.rel (0) target = $region25
    $region24: #{tpu_custom_call.1} parent=1 // pred_region
      %102 = dma.done [#allocation4], 128
    $region25: #{tpu_custom_call.1} parent=1 // pred_fallthru
      _
    %103 = vsyncpa [#allocation3], 1
    %104 = vsyncpa [#allocation6], 1
    %105 = vsyncpa [#allocation4], 1

</llo_original>
